<compile_context>
chip_gen: v7x
topology: tpu7x:2x2x1
jax: 0.10.0
libtpu: 0.0.40
codegen_flags: <defaults>
</compile_context>

<pallas_src>
import jax
import jax.numpy as jnp
from jax import lax
from jax.experimental import pallas as pl
from jax.experimental.pallas import tpu as pltpu

HIDDEN = 128


def discriminator_kernel(x_ref, w1_ref, b1_ref, w2_ref, b2_ref, o_ref):
    # Layer 1 on the MXU: bf16 operands, f32 accumulation.
    h = jnp.dot(x_ref[...], w1_ref[...],
                preferred_element_type=jnp.float32)          # [TB, H] f32
    h = jnp.maximum(h + b1_ref[...], 0.0)                    # bias + ReLU (f32, VPU)

    # Layer 2 (H -> 1) as a transposed contraction producing a lane-dense row:
    #   (1, H) . (TB, H)^T  ->  (1, TB)
    # This keeps the store path unmasked/lane-dense (batch on the lane axis).
    z = lax.dot_general(w2_ref[...], h,
                        dimension_numbers=(((1,), (1,)), ((), ())),
                        preferred_element_type=jnp.float32)  # [1, TB]
    z = z + b2_ref[0, 0]                                     # scalar bias from SMEM
    o_ref[...] = 1.0 / (1.0 + jnp.exp(-z))                   # Sigmoid (EUP exp)


def discriminator_forward(x, w1, b1, w2, b2, *, tile_b=1024):
    B, D = x.shape
    H = w1.shape[1]

    # Lane-dense batch tile: multiple of 128 (fills v5e MXU rows), default 1024
    # (multiple of 256 for v6e/v7x MXU passes). Tiny per-tile VMEM footprint
    # (2-buffered bf16 x-tile + f32 hidden << 16 MiB) -> safe on v5e/v6e/v7x.
    tile_b = max(128, min(tile_b, pl.cdiv(B, 128) * 128))
    b_pad = pl.cdiv(B, tile_b) * tile_b
    if b_pad != B:
        x = jnp.pad(x, ((0, b_pad - B), (0, 0)))
    num_tiles = b_pad // tile_b

    # bf16 on the MXU operands only; elementwise math stays f32 (v5e-safe).
    x_bf16 = x.astype(jnp.bfloat16)
    w1_bf16 = w1.astype(jnp.bfloat16)
    b1_f32 = b1.reshape(1, H).astype(jnp.float32)
    w2_row = w2.reshape(1, H).astype(jnp.float32)   # (H,1) column -> (1,H) row
    b2_f32 = b2.reshape(1, 1).astype(jnp.float32)

    flops = 2 * b_pad * D * H + 2 * b_pad * H + 3 * b_pad
    bytes_accessed = (b_pad * D * 2        # x (bf16)
                      + D * H * 2          # w1 (bf16)
                      + (H + H + 1) * 4    # b1, w2 row, b2 (f32)
                      + b_pad * 4)         # output (f32)

    out_row = pl.pallas_call(
        discriminator_kernel,
        out_shape=jax.ShapeDtypeStruct((1, b_pad), jnp.float32),
        grid=(num_tiles,),
        in_specs=[
            pl.BlockSpec((tile_b, D), lambda i: (i, 0)),          # x: batch-tiled, pipelined
            pl.BlockSpec((D, H), lambda i: (0, 0)),               # w1: resident
            pl.BlockSpec((1, H), lambda i: (0, 0)),               # b1: resident
            pl.BlockSpec((1, H), lambda i: (0, 0)),               # w2 row: resident
            pl.BlockSpec(memory_space=pltpu.MemorySpace.SMEM),    # b2: SMEM scalar
        ],
        out_specs=pl.BlockSpec((1, tile_b), lambda i: (0, i)),    # lane-dense row per tile
        compiler_params=pltpu.CompilerParams(
            dimension_semantics=("parallel",),
        ),
        cost_estimate=pl.CostEstimate(
            flops=flops, transcendentals=b_pad, bytes_accessed=bytes_accessed),
    )(x_bf16, w1_bf16, b1_f32, w2_row, b2_f32)

    return out_row.reshape(b_pad, 1)[:B]


def init_params(key, input_dim, hidden=HIDDEN):
    # Deterministic init mimicking PyTorch's default Linear init (uniform +/- 1/sqrt(fan_in)).
    k1, k2, k3, k4 = jax.random.split(key, 4)
    lim1 = 1.0 / jnp.sqrt(jnp.float32(input_dim))
    lim2 = 1.0 / jnp.sqrt(jnp.float32(hidden))
    w1 = jax.random.uniform(k1, (input_dim, hidden), jnp.float32, -lim1, lim1)
    b1 = jax.random.uniform(k2, (1, hidden), jnp.float32, -lim1, lim1)
    w2 = jax.random.uniform(k3, (hidden, 1), jnp.float32, -lim2, lim2)
    b2 = jax.random.uniform(k4, (1, 1), jnp.float32, -lim2, lim2)
    return w1, b1, w2, b2


if __name__ == "__main__":
    key = jax.random.PRNGKey(0)
    kx, kp = jax.random.split(key)

    batch, input_dim = 8, 32
    x = jax.random.normal(kx, (batch, input_dim), jnp.float32)
    w1, b1, w2, b2 = init_params(kp, input_dim)

    out = discriminator_forward(x, w1, b1, w2, b2)
    out = jax.block_until_ready(out)

    # Reference in f32 (same semantics as the PyTorch module); tolerance loosened
    # for the bf16 first-layer matmul.
    ref = jax.nn.sigmoid(jnp.maximum(x @ w1 + b1, 0.0) @ w2 + b2)
    assert out.shape == (batch, 1)
    assert jnp.allclose(out, ref, atol=2e-2, rtol=2e-2), float(jnp.max(jnp.abs(out - ref)))

    print("KERNEL_OK")
</pallas_src>

<mosaic_0001>
module attributes {stable_mosaic.version = 11 : i64} {
  func.func @discriminator_kernel(%arg0: i32, %arg1: memref<128x32xbf16, #tpu.memory_space<vmem>>, %arg2: memref<32x128xbf16, #tpu.memory_space<vmem>>, %arg3: memref<1x128xf32, #tpu.memory_space<vmem>>, %arg4: memref<1x128xf32, #tpu.memory_space<vmem>>, %arg5: memref<1x1xf32, #tpu.memory_space<smem>>, %arg6: memref<1x128xf32, #tpu.memory_space<vmem>>) attributes {dimension_semantics = [#tpu.dimension_semantics<parallel>], iteration_bounds = array<i64: 1>, scalar_prefetch = 0 : i64, scratch_operands = 0 : i64, tpu.core_type = #tpu.core_type<tc>, window_params = [{transform_indices = @transform_0, window_bounds = array<i64: 128, 32>}, {pipeline_mode = #tpu.pipeline_mode<synchronous>, transform_indices = @transform_1, window_bounds = array<i64: 32, 128>}, {pipeline_mode = #tpu.pipeline_mode<synchronous>, transform_indices = @transform_2, window_bounds = array<i64: 1, 128>}, {pipeline_mode = #tpu.pipeline_mode<synchronous>, transform_indices = @transform_3, window_bounds = array<i64: 1, 128>}, {transform_indices = @transform_4, window_bounds = array<i64: 1, 1>}, {transform_indices = @transform_5, window_bounds = array<i64: 1, 128>}]} {
    %c0 = arith.constant 0 : index
    %c0_0 = arith.constant 0 : index
    %0 = vector.load %arg1[%c0, %c0_0] : memref<128x32xbf16, #tpu.memory_space<vmem>>, vector<128x32xbf16>
    %c0_1 = arith.constant 0 : index
    %c0_2 = arith.constant 0 : index
    %1 = vector.load %arg2[%c0_1, %c0_2] : memref<32x128xbf16, #tpu.memory_space<vmem>>, vector<32x128xbf16>
    %cst = arith.constant dense<0.000000e+00> : vector<128x128xf32>
    %2 = tpu.matmul %0, %1, %cst {dimension_numbers = #tpu.dot_dimension_numbers<[1], [0], [0], [1], [0, 0, 1, 1], [], []>} : vector<128x32xbf16>, vector<32x128xbf16>, vector<128x128xf32> -> vector<128x128xf32>
    %c0_3 = arith.constant 0 : index
    %c0_4 = arith.constant 0 : index
    %3 = vector.load %arg3[%c0_3, %c0_4] : memref<1x128xf32, #tpu.memory_space<vmem>>, vector<1x128xf32>
    %4 = vector.broadcast %3 : vector<1x128xf32> to vector<128x128xf32>
    %5 = arith.addf %2, %4 : vector<128x128xf32>
    %cst_5 = arith.constant 0.000000e+00 : f32
    %6 = vector.broadcast %cst_5 : f32 to vector<128x128xf32>
    %7 = arith.maximumf %5, %6 : vector<128x128xf32>
    %c0_6 = arith.constant 0 : index
    %c0_7 = arith.constant 0 : index
    %8 = vector.load %arg4[%c0_6, %c0_7] : memref<1x128xf32, #tpu.memory_space<vmem>>, vector<1x128xf32>
    %cst_8 = arith.constant dense<0.000000e+00> : vector<1x128xf32>
    %9 = tpu.matmul %8, %7, %cst_8 {dimension_numbers = #tpu.dot_dimension_numbers<[1], [1], [0], [0], [0, 0, 1, 0], [], []>} : vector<1x128xf32>, vector<128x128xf32>, vector<1x128xf32> -> vector<1x128xf32>
    %c0_9 = arith.constant 0 : index
    %c0_10 = arith.constant 0 : index
    %10 = memref.load %arg5[%c0_9, %c0_10] : memref<1x1xf32, #tpu.memory_space<smem>>
    %11 = vector.broadcast %10 : f32 to vector<1x128xf32>
    %12 = arith.addf %9, %11 : vector<1x128xf32>
    %cst_11 = arith.constant 0.000000e+00 : f32
    %13 = vector.broadcast %cst_11 : f32 to vector<1x128xf32>
    %14 = arith.subf %13, %12 : vector<1x128xf32>
    %15 = math.exp %14 : vector<1x128xf32>
    %cst_12 = arith.constant 1.000000e+00 : f32
    %16 = vector.broadcast %cst_12 : f32 to vector<1x128xf32>
    %17 = arith.addf %16, %15 : vector<1x128xf32>
    %cst_13 = arith.constant 1.000000e+00 : f32
    %18 = vector.broadcast %cst_13 : f32 to vector<1x128xf32>
    %19 = arith.divf %18, %17 : vector<1x128xf32>
    %c0_14 = arith.constant 0 : index
    %c0_15 = arith.constant 0 : index
    %20 = vector.load %arg6[%c0_14, %c0_15] : memref<1x128xf32, #tpu.memory_space<vmem>>, vector<1x128xf32>
    tpu.vector_store %arg6[%c0_14, %c0_15], %19 {strides = array<i32>} : memref<1x128xf32, #tpu.memory_space<vmem>>, vector<1x128xf32>,
    return
  }
  func.func @transform_0(%arg0: i32) -> (i32, i32) {
    %c0_i32 = arith.constant 0 : i32
    %c0_i32_0 = arith.constant 0 : i32
    return %arg0, %c0_i32 : i32, i32
  }
  func.func @transform_1(%arg0: i32) -> (i32, i32) {
    %c0_i32 = arith.constant 0 : i32
    %c0_i32_0 = arith.constant 0 : i32
    %c0_i32_1 = arith.constant 0 : i32
    return %c0_i32, %c0_i32_0 : i32, i32
  }
  func.func @transform_2(%arg0: i32) -> (i32, i32) {
    %c0_i32 = arith.constant 0 : i32
    %c0_i32_0 = arith.constant 0 : i32
    %c0_i32_1 = arith.constant 0 : i32
    return %c0_i32, %c0_i32_0 : i32, i32
  }
  func.func @transform_3(%arg0: i32) -> (i32, i32) {
    %c0_i32 = arith.constant 0 : i32
    %c0_i32_0 = arith.constant 0 : i32
    %c0_i32_1 = arith.constant 0 : i32
    return %c0_i32, %c0_i32_0 : i32, i32
  }
  func.func @transform_4(%arg0: i32) -> (i32, i32) {
    %c0_i32 = arith.constant 0 : i32
    %c0_i32_0 = arith.constant 0 : i32
    %c0_i32_1 = arith.constant 0 : i32
    return %c0_i32, %c0_i32_0 : i32, i32
  }
  func.func @transform_5(%arg0: i32) -> (i32, i32) {
    %c0_i32 = arith.constant 0 : i32
    %c0_i32_0 = arith.constant 0 : i32
    return %c0_i32, %arg0 : i32, i32
  }
}

</mosaic_0001>

<llo_original>
// kernel: tpu_custom_call.1
$region0: #{tpu_custom_call.1}
  #allocation0 [shape = 'u32[]', space=smem, size = 0x4, offset = 0x4, fixed_abs, tag = 'smem constant byte address 0x4 - core index']
  #allocation1 [shape = 'u32[144,128]{1,0:T(1,128)}', space=vmem, size = 0x12000, scoped, tag = 'internal scratch']
  #allocation2 [shape = 'f32[1,1]{1,0:T(1,128)S(6)}', space=smem, size = 0x200, scoped, tag = 'scoped memory for tpu_custom_call.1']
  %s0 = inlined_call_operand.vmem [shape: bf16[128,32], index: 0, kind: input, shape index: {}]
  %s1 = inlined_call_operand.vmem [shape: bf16[32,128], index: 1, kind: input, shape index: {}]
  %s2 = inlined_call_operand.vmem [shape: f32[1,128], index: 2, kind: input, shape index: {}]
  %s3 = inlined_call_operand.vmem [shape: f32[1,128], index: 3, kind: input, shape index: {}]
  %s4 = inlined_call_operand.<no memory space> [shape: f32[1,1], index: 4, kind: input, shape index: {}]
  %s5 = inlined_call_operand.hbm [shape: f32[1,128], index: 5, kind: output, shape index: {}]
  %s6 = sld [smem:[#allocation0]]
  $region30: #{tpu_custom_call.1} parent=0
    _
  %s8 = ssub.s32 1, %s6
  %s9 = scalar_select 0, %s8, %s6
  %10 = sst [smem:[#allocation2]] %s4
  $region1: #{tpu_custom_call.1} parent=0
    #allocation3 [shape = 'u8[512]{0}', space=vmem, size = 0x400, scoped, tag = 'output window, operand 0, single buffered']
    #allocation4 [shape = 's32[1]{0}', space=sflag, size = 0x4, scoped, tag = 'scoped memory for tpu_custom_call.1']
    %11 = vsyncpa [#allocation4], 0
    // Predicated region
    $region2: #{tpu_custom_call.1} parent=1 // pred_check
      _
    $region3: #{tpu_custom_call.1} parent=1 // pred_check_branch
      %13 = sbr.rel (0) target = $region5
    $region4: #{tpu_custom_call.1} parent=1 // pred_region
      _
    $region5: #{tpu_custom_call.1} parent=1 // pred_fallthru
      _
    // Predicated region
    $region6: #{tpu_custom_call.1} parent=1 // pred_check
      _
    $region7: #{tpu_custom_call.1} parent=1 // pred_check_branch
      %15 = sbr.rel (0) target = $region9
    $region8: #{tpu_custom_call.1} parent=1 // pred_region
      _
    $region9: #{tpu_custom_call.1} parent=1 // pred_fallthru
      _
    // Predicated region
    $region10: #{tpu_custom_call.1} parent=1 // pred_check
      _
    $region11: #{tpu_custom_call.1} parent=1 // pred_check_branch
      %17 = sbr.rel (0) target = $region13
    $region12: #{tpu_custom_call.1} parent=1 // pred_region
      _
    $region13: #{tpu_custom_call.1} parent=1 // pred_fallthru
      _
    // Predicated region
    $region14: #{tpu_custom_call.1} parent=1 // pred_check
      _
    $region15: #{tpu_custom_call.1} parent=1 // pred_check_branch
      %19 = sbr.rel (0) target = $region17
    $region16: #{tpu_custom_call.1} parent=1 // pred_region
      _
    $region17: #{tpu_custom_call.1} parent=1 // pred_fallthru
      _
    // Predicated region
    $region18: #{tpu_custom_call.1} parent=1 // pred_check
      _
    $region19: #{tpu_custom_call.1} parent=1 // pred_check_branch
      %21 = sbr.rel (0) target = $region21
    $region20: #{tpu_custom_call.1} parent=1 // pred_region
      _
    $region21: #{tpu_custom_call.1} parent=1 // pred_fallthru
      _
    %v23 = vld [vmem:[%s0] sm:$0xf]
    %v24 = vld [vmem:[%s0 + $0x4] sm:$0xf]
    %v25 = vld [vmem:[%s0 + $0x8] sm:$0xf]
    %v26 = vld [vmem:[%s0 + $0xc] sm:$0xf]
    %v27 = vld [vmem:[%s0 + $0x10] sm:$0xf]
    %v28 = vld [vmem:[%s0 + $0x14] sm:$0xf]
    %v29 = vld [vmem:[%s0 + $0x18] sm:$0xf]
    %v30 = vld [vmem:[%s0 + $0x1c] sm:$0xf]
    %v31 = vld [vmem:[%s0 + $0x20] sm:$0xf]
    %v32 = vld [vmem:[%s0 + $0x24] sm:$0xf]
    %v33 = vld [vmem:[%s0 + $0x28] sm:$0xf]
    %v34 = vld [vmem:[%s0 + $0x2c] sm:$0xf]
    %v35 = vld [vmem:[%s0 + $0x30] sm:$0xf]
    %v36 = vld [vmem:[%s0 + $0x34] sm:$0xf]
    %v37 = vld [vmem:[%s0 + $0x38] sm:$0xf]
    %v38 = vld [vmem:[%s0 + $0x3c] sm:$0xf]
    %v39 = vld [vmem:[%s1] sm:$0xf]
    %v40 = vld [vmem:[%s1 + $0x4] sm:$0xf]
    %v41 = vld [vmem:[%s1 + $0x8] sm:$0xf]
    %v42 = vld [vmem:[%s1 + $0xc] sm:$0xf]
    %v43 = vld [vmem:[%s2] sm:$0x1]
    %v45 = vlaneseq
    %v46 = vshrl.u32 %v45, 7
    %v47 = vsub.s32 0, %v46
    %v48 = vrot.slane %v43, %v47
    %v66 = vunpack.c.l.b16 %v23
    %v67 = vunpack.c.l.b16 %v24
    %v68 = vunpack.c.l.b16 %v25
    %v69 = vunpack.c.l.b16 %v26
    %v70 = vunpack.c.l.b16 %v27
    %v71 = vunpack.c.l.b16 %v28
    %v72 = vunpack.c.l.b16 %v29
    %v73 = vunpack.c.l.b16 %v30
    %v74 = vunpack.c.l.b16 %v31
    %v75 = vunpack.c.l.b16 %v32
    %v76 = vunpack.c.l.b16 %v33
    %v77 = vunpack.c.l.b16 %v34
    %v78 = vunpack.c.l.b16 %v35
    %v79 = vunpack.c.l.b16 %v36
    %v80 = vunpack.c.l.b16 %v37
    %v81 = vunpack.c.l.b16 %v38
    %v82 = vpack.c.b16 %v67, %v66
    %v83 = vpack.c.b16 %v69, %v68
    %v84 = vpack.c.b16 %v71, %v70
    %v85 = vpack.c.b16 %v73, %v72
    %v86 = vpack.c.b16 %v75, %v74
    %v87 = vpack.c.b16 %v77, %v76
    %v88 = vpack.c.b16 %v79, %v78
    %v89 = vpack.c.b16 %v81, %v80
    %v94 = vunpack.c.l.b16 %v39
    %v95 = vunpack.c.l.b16 %v40
    %v96 = vunpack.c.l.b16 %v41
    %v97 = vunpack.c.l.b16 %v42
    %v98 = vpack.c.b16 %v95, %v94
    %v99 = vpack.c.b16 %v97, %v96
    %vm102 = vcmask 261120
    %v104 = vsel %vm102, %v82, 0
    %v107 = vsel %vm102, %v83, 0
    %v110 = vsel %vm102, %v84, 0
    %v113 = vsel %vm102, %v85, 0
    %v116 = vsel %vm102, %v86, 0
    %v119 = vsel %vm102, %v87, 0
    %v122 = vsel %vm102, %v88, 0
    %v125 = vsel %vm102, %v89, 0
    %127 = vmatprep.subr.bf16.mxu0 0
    %128 = vmatpush1.bf16.msra.mxu0 %v98
    %129 = vmatprep.subr.bf16.mxu0 0
    %130 = vmatpush1.bf16.msra.mxu0 %v99
    %131 = vmatprep.subr.bf16.mxu0 0
    %132 = vmatpush1.bf16.msra.mxu0 0
    %133 = vmatprep.subr.bf16.mxu0 0
    %134 = vmatpush1.bf16.msra.mxu0 0
    %135 = vmatprep.subr.bf16.mxu0 0
    %136 = vmatpush1.bf16.msra.mxu0 0
    %137 = vmatprep.subr.bf16.mxu0 0
    %138 = vmatpush1.bf16.msra.mxu0 0
    %139 = vmatprep.subr.bf16.mxu0 0
    %140 = vmatpush1.bf16.msra.mxu0 0
    %141 = vmatprep.subr.bf16.mxu0 0
    %142 = vmatpush1.bf16.msra.mxu0 0
    %143 = vmatprep.subr.bf16.mxu0 0
    %144 = vmatpush1.bf16.msra.mxu0 0
    %145 = vmatprep.subr.bf16.mxu0 0
    %146 = vmatpush1.bf16.msra.mxu0 0
    %147 = vmatprep.subr.bf16.mxu0 0
    %148 = vmatpush1.bf16.msra.mxu0 0
    %149 = vmatprep.subr.bf16.mxu0 0
    %150 = vmatpush1.bf16.msra.mxu0 0
    %151 = vmatprep.subr.bf16.mxu0 0
    %152 = vmatpush1.bf16.msra.mxu0 0
    %153 = vmatprep.subr.bf16.mxu0 0
    %154 = vmatpush1.bf16.msra.mxu0 0
    %155 = vmatprep.subr.bf16.mxu0 0
    %156 = vmatpush1.bf16.msra.mxu0 0
    %157 = vmatprep.subr.bf16.mxu0 0
    %158 = vmatpush1.bf16.msra.mxu0 0
    %159 = vmatprep.mubr.bf16.mxu0 0
    %160 = vmatmul.mubr.bf16.gmra.mrb[0].mxu0 %v104
    %v161 = vpop.f32.mrb[0].mxu0
    %v162 = vadd.f32 %v48, %v161
    %v163 = vpop.f32.mrb[0].mxu0
    %v164 = vpop.f32.mrb[0].mxu0
    %v165 = vadd.f32 %v48, %v164
    %v166 = vpop.f32.mrb[0].mxu0
    %167 = vmatprep.mubr.bf16.mxu0 0
    %168 = vmatmul.mubr.bf16.gmra.mrb[0].mxu0 %v107
    %v169 = vpop.f32.mrb[0].mxu0
    %v170 = vadd.f32 %v48, %v169
    %v171 = vpop.f32.mrb[0].mxu0
    %v172 = vpop.f32.mrb[0].mxu0
    %v173 = vadd.f32 %v48, %v172
    %v174 = vpop.f32.mrb[0].mxu0
    %175 = vmatprep.mubr.bf16.mxu0 0
    %176 = vmatmul.mubr.bf16.gmra.mrb[0].mxu0 %v110
    %v177 = vpop.f32.mrb[0].mxu0
    %v178 = vadd.f32 %v48, %v177
    %v179 = vpop.f32.mrb[0].mxu0
    %v180 = vpop.f32.mrb[0].mxu0
    %v181 = vadd.f32 %v48, %v180
    %v182 = vpop.f32.mrb[0].mxu0
    %183 = vmatprep.mubr.bf16.mxu0 0
    %184 = vmatmul.mubr.bf16.gmra.mrb[0].mxu0 %v113
    %v185 = vpop.f32.mrb[0].mxu0
    %v186 = vadd.f32 %v48, %v185
    %v187 = vpop.f32.mrb[0].mxu0
    %v188 = vpop.f32.mrb[0].mxu0
    %v189 = vadd.f32 %v48, %v188
    %v190 = vpop.f32.mrb[0].mxu0
    %191 = vmatprep.mubr.bf16.mxu0 0
    %192 = vmatmul.mubr.bf16.gmra.mrb[0].mxu0 %v116
    %v193 = vpop.f32.mrb[0].mxu0
    %v194 = vadd.f32 %v48, %v193
    %v195 = vpop.f32.mrb[0].mxu0
    %v196 = vpop.f32.mrb[0].mxu0
    %v197 = vadd.f32 %v48, %v196
    %v198 = vpop.f32.mrb[0].mxu0
    %199 = vmatprep.mubr.bf16.mxu0 0
    %200 = vmatmul.mubr.bf16.gmra.mrb[0].mxu0 %v119
    %v201 = vpop.f32.mrb[0].mxu0
    %v202 = vadd.f32 %v48, %v201
    %v203 = vpop.f32.mrb[0].mxu0
    %v204 = vpop.f32.mrb[0].mxu0
    %v205 = vadd.f32 %v48, %v204
    %v206 = vpop.f32.mrb[0].mxu0
    %207 = vmatprep.mubr.bf16.mxu0 0
    %208 = vmatmul.mubr.bf16.gmra.mrb[0].mxu0 %v122
    %v209 = vpop.f32.mrb[0].mxu0
    %v210 = vadd.f32 %v48, %v209
    %v211 = vpop.f32.mrb[0].mxu0
    %v212 = vpop.f32.mrb[0].mxu0
    %v213 = vadd.f32 %v48, %v212
    %v214 = vpop.f32.mrb[0].mxu0
    %215 = vmatprep.mubr.bf16.mxu0 0
    %216 = vmatmul.mubr.bf16.gmra.mrb[0].mxu0 %v125
    %v217 = vpop.f32.mrb[0].mxu0
    %v218 = vadd.f32 %v48, %v217
    %v219 = vpop.f32.mrb[0].mxu0
    %v220 = vpop.f32.mrb[0].mxu0
    %v221 = vadd.f32 %v48, %v220
    %v222 = vpop.f32.mrb[0].mxu0
    %223 = vdwg.mxu0
    %v224 = vmax.f32 %v162, 0.0
    %v225 = vmax.f32 %v165, 0.0
    %v226 = vmax.f32 %v170, 0.0
    %v227 = vmax.f32 %v173, 0.0
    %v228 = vmax.f32 %v178, 0.0
    %v229 = vmax.f32 %v181, 0.0
    %v230 = vmax.f32 %v186, 0.0
    %v231 = vmax.f32 %v189, 0.0
    %v232 = vmax.f32 %v194, 0.0
    %v233 = vmax.f32 %v197, 0.0
    %v234 = vmax.f32 %v202, 0.0
    %v235 = vmax.f32 %v205, 0.0
    %v236 = vmax.f32 %v210, 0.0
    %v237 = vmax.f32 %v213, 0.0
    %v238 = vmax.f32 %v218, 0.0
    %v239 = vmax.f32 %v221, 0.0
    %v240 = vld [vmem:[%s3] sm:$0x1]
    %s241 = sld [smem:[#allocation2]]
    %v242 = vstv %s241
    %243 = vmatprep.subr.mxu0 0.0
    %244 = vmatpush1.xpose.msra.mxu0 %v224
    %245 = vmatprep.subr.mxu0 0.0
    %246 = vmatpush1.xpose.msra.mxu0 %v225
    %247 = vmatprep.subr.mxu0 0.0
    %248 = vmatpush1.xpose.msra.mxu0 %v226
    %249 = vmatprep.subr.mxu0 0.0
    %250 = vmatpush1.xpose.msra.mxu0 %v227
    %251 = vmatprep.subr.mxu0 0.0
    %252 = vmatpush1.xpose.msra.mxu0 %v228
    %253 = vmatprep.subr.mxu0 0.0
    %254 = vmatpush1.xpose.msra.mxu0 %v229
    %255 = vmatprep.subr.mxu0 0.0
    %256 = vmatpush1.xpose.msra.mxu0 %v230
    %257 = vmatprep.subr.mxu0 0.0
    %258 = vmatpush1.xpose.msra.mxu0 %v231
    %259 = vmatprep.subr.mxu0 0.0
    %260 = vmatpush1.xpose.msra.mxu0 %v232
    %261 = vmatprep.subr.mxu0 0.0
    %262 = vmatpush1.xpose.msra.mxu0 %v233
    %263 = vmatprep.subr.mxu0 0.0
    %264 = vmatpush1.xpose.msra.mxu0 %v234
    %265 = vmatprep.subr.mxu0 0.0
    %266 = vmatpush1.xpose.msra.mxu0 %v235
    %267 = vmatprep.subr.mxu0 0.0
    %268 = vmatpush1.xpose.msra.mxu0 %v236
    %269 = vmatprep.subr.mxu0 0.0
    %270 = vmatpush1.xpose.msra.mxu0 %v237
    %271 = vmatprep.subr.mxu0 0.0
    %272 = vmatpush1.xpose.msra.mxu0 %v238
    %273 = vmatprep.subr.mxu0 0.0
    %274 = vmatpush1.xpose.msra.mxu0 %v239
    %275 = vmatprep.subr.mxu0 0.0
    %276 = vmatpush1.xpose.msra.mxu0 0.0
    %277 = vmatprep.subr.mxu0 0.0
    %278 = vmatpush1.xpose.msra.mxu0 0.0
    %279 = vmatprep.subr.mxu0 0.0
    %280 = vmatpush1.xpose.msra.mxu0 0.0
    %281 = vmatprep.subr.mxu0 0.0
    %282 = vmatpush1.xpose.msra.mxu0 0.0
    %283 = vmatprep.subr.mxu0 0.0
    %284 = vmatpush1.xpose.msra.mxu0 0.0
    %285 = vmatprep.subr.mxu0 0.0
    %286 = vmatpush1.xpose.msra.mxu0 0.0
    %287 = vmatprep.subr.mxu0 0.0
    %288 = vmatpush1.xpose.msra.mxu0 0.0
    %289 = vmatprep.subr.mxu0 0.0
    %290 = vmatpush1.xpose.msra.mxu0 0.0
    %291 = vmatprep.subr.mxu0 0.0
    %292 = vmatpush1.xpose.msra.mxu0 0.0
    %293 = vmatprep.subr.mxu0 0.0
    %294 = vmatpush1.xpose.msra.mxu0 0.0
    %295 = vmatprep.subr.mxu0 0.0
    %296 = vmatpush1.xpose.msra.mxu0 0.0
    %297 = vmatprep.subr.mxu0 0.0
    %298 = vmatpush1.xpose.msra.mxu0 0.0
    %299 = vmatprep.subr.mxu0 0.0
    %300 = vmatpush1.xpose.msra.mxu0 0.0
    %301 = vmatprep.subr.mxu0 0.0
    %302 = vmatpush1.xpose.msra.mxu0 0.0
    %303 = vmatprep.subr.mxu0 0.0
    %304 = vmatpush1.xpose.msra.mxu0 0.0
    %305 = vmatprep.subr.mxu0 0.0
    %306 = vmatpush1.xpose.msra.mxu0 0.0
    %307 = vmatprep.mubr.f32.mxu0 0.0
    %308 = vmatmul.mubr.f32.gmra.mrb[0].mxu0 %v240
    %v309 = vpop.f32.mrb[0].mxu0
    %v310 = vadd.f32 %v242, %v309
    %v311 = vpop.f32.mrb[0].mxu0
    %312 = vdwg.mxu0
    %v313 = vsub.f32 0.0, %v310
    %v314 = vmul.f32 %v313, 1.442695
    %v315 = vpow.pop %v314
    %v316 = vadd.f32 %v315, 1.0
    %v317 = vrcp.pop %v316
    %v318 = vmul.f32 1.0, %v317
    %319 = vst [vmem:[#allocation3] sm:$0x1] %v318
    // Predicated region
    $region22: #{tpu_custom_call.1} parent=1 // pred_check
      _
    $region23: #{tpu_custom_call.1} parent=1 // pred_check_branch
      %321 = sbr.rel (0) target = $region25
    $region24: #{tpu_custom_call.1} parent=1 // pred_region
      %s323 = ssub.s32 16, 16
      %324 = vsyncadd [#allocation4], %s323
      %s326 = sshll.u32 [#allocation3], 4
      %s327 = int_to_ptr.vmem [resolvable:$true] %s326
      %329 = dma.vmem_to_hbm [thread:$0]  %s327, 16, %s5, [#allocation4]
    $region25: #{tpu_custom_call.1} parent=1 // pred_fallthru
      _
    // Predicated region
    $region26: #{tpu_custom_call.1} parent=1 // pred_check
      _
    $region27: #{tpu_custom_call.1} parent=1 // pred_check_branch
      %331 = sbr.rel (0) target = $region29
    $region28: #{tpu_custom_call.1} parent=1 // pred_region
      %332 = dma.done [#allocation4], 16
    $region29: #{tpu_custom_call.1} parent=1 // pred_fallthru
      _
    %333 = vsyncpa [#allocation4], 1

</llo_original>
